<compile_context>
chip_gen: v5e
topology: v5e:2x2
jax: 0.10.0
libtpu: 0.0.40
codegen_flags: <defaults>
</compile_context>

<pallas_src>
import jax
import jax.numpy as jnp
from jax.experimental import pallas as pl
from jax.experimental.pallas import tpu as pltpu


def _matmul_add_kernel(inp_ref, x1_ref, x2_ref, o_ref):
    # Single MXU push + drain; add rides the VPU. All refs are whole (3, 3)
    # arrays resident in VMEM.
    o_ref[...] = (
        jnp.dot(inp_ref[...], x1_ref[...], preferred_element_type=jnp.float32)
        + x2_ref[...]
    )


def model_forward(inp, x1, x2):
    M = inp.shape[0]
    N = x1.shape[1]
    vmem = pl.BlockSpec(memory_space=pltpu.MemorySpace.VMEM)
    return pl.pallas_call(
        _matmul_add_kernel,
        out_shape=jax.ShapeDtypeStruct((M, N), jnp.float32),
        in_specs=[vmem, vmem, vmem],
        out_specs=vmem,
    )(inp, x1, x2)


if __name__ == "__main__":
    key = jax.random.PRNGKey(0)
    k_inp, k_x1, k_x2 = jax.random.split(key, 3)

    # Deterministic stand-in for the module's self.inp = torch.randn(3, 3)
    inp = jax.random.normal(k_inp, (3, 3), dtype=jnp.float32)
    x1 = jax.random.normal(k_x1, (3, 3), dtype=jnp.float32)
    x2 = jax.random.normal(k_x2, (3, 3), dtype=jnp.float32)

    out = model_forward(inp, x1, x2)
    jax.block_until_ready(out)

    # Reference check in plain JAX
    ref = inp @ x1 + x2
    assert jnp.allclose(out, ref, atol=1e-5, rtol=1e-5), "mismatch vs reference"

    print("KERNEL_OK")
</pallas_src>

<mosaic_0001>
module attributes {stable_mosaic.version = 11 : i64} {
  func.func @_matmul_add_kernel(%arg0: memref<3x3xf32, #tpu.memory_space<vmem>>, %arg1: memref<3x3xf32, #tpu.memory_space<vmem>>, %arg2: memref<3x3xf32, #tpu.memory_space<vmem>>, %arg3: memref<3x3xf32, #tpu.memory_space<vmem>>) attributes {dimension_semantics = [], scalar_prefetch = 0 : i64, scratch_operands = 0 : i64, tpu.core_type = #tpu.core_type<tc>} {
    %c0 = arith.constant 0 : index
    %c0_0 = arith.constant 0 : index
    %0 = vector.load %arg0[%c0, %c0_0] : memref<3x3xf32, #tpu.memory_space<vmem>>, vector<3x3xf32>
    %c0_1 = arith.constant 0 : index
    %c0_2 = arith.constant 0 : index
    %1 = vector.load %arg1[%c0_1, %c0_2] : memref<3x3xf32, #tpu.memory_space<vmem>>, vector<3x3xf32>
    %cst = arith.constant dense<0.000000e+00> : vector<3x3xf32>
    %2 = tpu.matmul %0, %1, %cst {dimension_numbers = #tpu.dot_dimension_numbers<[1], [0], [0], [1], [0, 0, 1, 1], [], []>} : vector<3x3xf32>, vector<3x3xf32>, vector<3x3xf32> -> vector<3x3xf32>
    %c0_3 = arith.constant 0 : index
    %c0_4 = arith.constant 0 : index
    %3 = vector.load %arg2[%c0_3, %c0_4] : memref<3x3xf32, #tpu.memory_space<vmem>>, vector<3x3xf32>
    %4 = arith.addf %2, %3 : vector<3x3xf32>
    %c0_5 = arith.constant 0 : index
    %c0_6 = arith.constant 0 : index
    %5 = vector.load %arg3[%c0_5, %c0_6] : memref<3x3xf32, #tpu.memory_space<vmem>>, vector<3x3xf32>
    tpu.vector_store %arg3[%c0_5, %c0_6], %4 {strides = array<i32>} : memref<3x3xf32, #tpu.memory_space<vmem>>, vector<3x3xf32>,
    return
  }
}

</mosaic_0001>

<llo_original>
// kernel: tpu_custom_call.1
$region0: #{tpu_custom_call.1}
  #allocation0 [shape = 'u32[]', space=smem, size = 0x4, offset = 0x4, fixed_abs, tag = 'smem constant byte address 0x4 - core index']
  #allocation1 [shape = 'u32[72,128]{1,0:T(1,128)}', space=vmem, size = 0x9000, scoped, tag = 'internal scratch']
  %s0 = inlined_call_operand.hbm [shape: f32[3,3], index: 0, kind: input, shape index: {}]
  %s1 = inlined_call_operand.hbm [shape: f32[3,3], index: 1, kind: input, shape index: {}]
  %s2 = inlined_call_operand.hbm [shape: f32[3,3], index: 2, kind: input, shape index: {}]
  %s3 = inlined_call_operand.hbm [shape: f32[3,3], index: 3, kind: output, shape index: {}]
  %s4 = sld [smem:[#allocation0]]
  $region34: #{tpu_custom_call.1} parent=0
    _
  %s6 = ssub.s32 1, %s4
  %s7 = scalar_select 0, %s6, %s4
  $region1: #{tpu_custom_call.1} parent=0
    #allocation2 [shape = 'u8[2048]{0}', space=vmem, size = 0x800, scoped, tag = 'input window, operand 0, single buffered']
    #allocation3 [shape = 's32[1]{0}', space=sflag, size = 0x4, scoped, tag = 'scoped memory for tpu_custom_call.1']
    #allocation4 [shape = 's32[1]{0}', space=sflag, size = 0x4, scoped, tag = 'scoped memory for tpu_custom_call.1']
    #allocation5 [shape = 'u8[2048]{0}', space=vmem, size = 0x800, scoped, tag = 'input window, operand 1, single buffered']
    #allocation6 [shape = 's32[1]{0}', space=sflag, size = 0x4, scoped, tag = 'scoped memory for tpu_custom_call.1']
    #allocation7 [shape = 'u8[2048]{0}', space=vmem, size = 0x800, scoped, tag = 'input window, operand 2, single buffered']
    #allocation8 [shape = 'u8[2048]{0}', space=vmem, size = 0x800, scoped, tag = 'output window, operand 0, single buffered']
    %8 = vsyncpa [#allocation3], 0
    %9 = vsyncpa [#allocation6], 0
    %10 = vsyncpa [#allocation4], 0
    // Predicated region
    $region2: #{tpu_custom_call.1} parent=1 // pred_check
      _
    $region3: #{tpu_custom_call.1} parent=1 // pred_check_branch
      %12 = sbr.rel (0) target = $region5
    $region4: #{tpu_custom_call.1} parent=1 // pred_region
      %14 = vsyncadd [#allocation3], 0
      %s16 = sshll.u32 %s0, 4
      %s17 = int_to_ptr.hbm [resolvable:$true] %s16
      %s18 = sshll.u32 [#allocation2], 4
      %s19 = int_to_ptr.vmem [resolvable:$true] %s18
      %21 = dma.hbm_to_vmem [thread:$0]  %s17, 64, %s19, [#allocation3]
    $region5: #{tpu_custom_call.1} parent=1 // pred_fallthru
      _
    // Predicated region
    $region6: #{tpu_custom_call.1} parent=1 // pred_check
      _
    $region7: #{tpu_custom_call.1} parent=1 // pred_check_branch
      %23 = sbr.rel (0) target = $region9
    $region8: #{tpu_custom_call.1} parent=1 // pred_region
      %25 = vsyncadd [#allocation6], 0
      %s27 = sshll.u32 %s1, 4
      %s28 = int_to_ptr.hbm [resolvable:$true] %s27
      %s29 = sshll.u32 [#allocation5], 4
      %s30 = int_to_ptr.vmem [resolvable:$true] %s29
      %32 = dma.hbm_to_vmem [thread:$0]  %s28, 64, %s30, [#allocation6]
    $region9: #{tpu_custom_call.1} parent=1 // pred_fallthru
      _
    // Predicated region
    $region10: #{tpu_custom_call.1} parent=1 // pred_check
      _
    $region11: #{tpu_custom_call.1} parent=1 // pred_check_branch
      %34 = sbr.rel (0) target = $region13
    $region12: #{tpu_custom_call.1} parent=1 // pred_region
      %36 = vsyncadd [#allocation6], 0
      %s38 = sshll.u32 %s2, 4
      %s39 = int_to_ptr.hbm [resolvable:$true] %s38
      %s40 = sshll.u32 [#allocation7], 4
      %s41 = int_to_ptr.vmem [resolvable:$true] %s40
      %43 = dma.hbm_to_vmem [thread:$0]  %s39, 64, %s41, [#allocation6]
    $region13: #{tpu_custom_call.1} parent=1 // pred_fallthru
      _
    // Predicated region
    $region14: #{tpu_custom_call.1} parent=1 // pred_check
      _
    $region15: #{tpu_custom_call.1} parent=1 // pred_check_branch
      %45 = sbr.rel (0) target = $region17
    $region16: #{tpu_custom_call.1} parent=1 // pred_region
      %47 = dma.done [#allocation3], 64
    $region17: #{tpu_custom_call.1} parent=1 // pred_fallthru
      _
    // Predicated region
    $region18: #{tpu_custom_call.1} parent=1 // pred_check
      _
    $region19: #{tpu_custom_call.1} parent=1 // pred_check_branch
      %49 = sbr.rel (0) target = $region21
    $region20: #{tpu_custom_call.1} parent=1 // pred_region
      %51 = dma.done [#allocation6], 64
    $region21: #{tpu_custom_call.1} parent=1 // pred_fallthru
      _
    // Predicated region
    $region22: #{tpu_custom_call.1} parent=1 // pred_check
      _
    $region23: #{tpu_custom_call.1} parent=1 // pred_check_branch
      %53 = sbr.rel (0) target = $region25
    $region24: #{tpu_custom_call.1} parent=1 // pred_region
      %55 = dma.done [#allocation6], 64
    $region25: #{tpu_custom_call.1} parent=1 // pred_fallthru
      _
    %v56 = vld [vmem:[#allocation2] sm:$0x7]
    %v57 = vld [vmem:[#allocation5] sm:$0x7]
    %v58 = vld [vmem:[#allocation7] sm:$0x7]
    %vm59 = vcmask 23552
    %v61 = vsel %vm59, %v56, 0
    %vm63 = vcmask 1042432
    %v65 = vsel %vm63, %v57, 0
    %67 = vmatpush.msra.mxu0 0.0
    %68 = vmatpush.msra.mxu0 0.0
    %69 = vmatpush.msra.mxu0 0.0
    %70 = vmatpush.msra.mxu0 0.0
    %71 = vmatpush.msra.mxu0 0.0
    %72 = vmatpush.msra.mxu0 0.0
    %73 = vmatpush.msra.mxu0 0.0
    %74 = vmatpush.msra.mxu0 0.0
    %75 = vmatpush.msra.mxu0 0.0
    %76 = vmatpush.msra.mxu0 0.0
    %77 = vmatpush.msra.mxu0 0.0
    %78 = vmatpush.msra.mxu0 0.0
    %79 = vmatpush.msra.mxu0 0.0
    %80 = vmatpush.msra.mxu0 0.0
    %81 = vmatpush.msra.mxu0 0.0
    %82 = vmatpush.msra.mxu0 %v65
    %83 = vmatmul.f32.gmra.mxu0 %v61
    %v84 = vpop.f32.mrf.mxu0
    %v85 = vadd.f32 %v58, %v84
    %86 = vdwg.mxu0
    %vm87 = vcmask 18432
    %88 = vst.msk [vmem:[#allocation8] sm:$0x7] %vm87, %v85
    // Predicated region
    $region26: #{tpu_custom_call.1} parent=1 // pred_check
      _
    $region27: #{tpu_custom_call.1} parent=1 // pred_check_branch
      %90 = sbr.rel (0) target = $region29
    $region28: #{tpu_custom_call.1} parent=1 // pred_region
      %92 = vsyncadd [#allocation4], 0
      %s94 = sshll.u32 [#allocation8], 4
      %s95 = int_to_ptr.vmem [resolvable:$true] %s94
      %s96 = sshll.u32 %s3, 4
      %s97 = int_to_ptr.hbm [resolvable:$true] %s96
      %99 = dma.vmem_to_hbm [thread:$0]  %s95, 64, %s97, [#allocation4]
    $region29: #{tpu_custom_call.1} parent=1 // pred_fallthru
      _
    // Predicated region
    $region30: #{tpu_custom_call.1} parent=1 // pred_check
      _
    $region31: #{tpu_custom_call.1} parent=1 // pred_check_branch
      %101 = sbr.rel (0) target = $region33
    $region32: #{tpu_custom_call.1} parent=1 // pred_region
      %103 = dma.done [#allocation4], 64
    $region33: #{tpu_custom_call.1} parent=1 // pred_fallthru
      _
    %104 = vsyncpa [#allocation3], 1
    %105 = vsyncpa [#allocation6], 1
    %106 = vsyncpa [#allocation4], 1

</llo_original>
